<compile_context>
chip_gen: v7x
topology: tpu7x:2x2x1
jax: 0.10.0
libtpu: 0.0.40
codegen_flags: <defaults>
</compile_context>

<pallas_src>
import jax
import jax.numpy as jnp
from jax.experimental import pallas as pl
from jax.experimental.pallas import tpu as pltpu

LN_EPS = 1e-5
LANE = 128


def _round_up(x, m):
    return ((x + m - 1) // m) * m


def finalpred_mlp_kernel(x_ref, w1_ref, w2_ref, w3_ref, p_ref, o_ref):
    H = w1_ref.shape[1]          # hidden_unit
    O = w3_ref.shape[1]          # out_channels (unpadded)
    inv_h = jnp.float32(1.0 / H)
    w_dtype = w1_ref.dtype

    # Packed small params (f32 rows of one replicated slab -> a single DMA descriptor).
    b1  = p_ref[0:1, :H]
    g1  = p_ref[1:2, :H]
    be1 = p_ref[2:3, :H]
    b2  = p_ref[3:4, :H]
    g2  = p_ref[4:5, :H]
    be2 = p_ref[5:6, :H]
    b3  = p_ref[6:7, :O]

    def ln_relu(h, g, be):
        # Two-pass LayerNorm (subtract mean first) to avoid E[x^2]-(E[x])^2
        # cancellation; cheap because this kernel is HBM/overhead bound.
        mu = jnp.sum(h, axis=-1, keepdims=True) * inv_h
        d = h - mu
        var = jnp.sum(d * d, axis=-1, keepdims=True) * inv_h
        scale = g * jax.lax.rsqrt(var + LN_EPS)     # gamma folded into the rsqrt scale (EUP)
        return jnp.maximum(d * scale + be, 0.0)

    x = x_ref[...].astype(w_dtype)

    # ---- Linear 1 -> LayerNorm -> ReLU (f32 accumulation, f32 LN math) ----
    h = jnp.dot(x, w1_ref[...], preferred_element_type=jnp.float32) + b1
    h = ln_relu(h, g1, be1)

    # ---- Linear 2 -> LayerNorm -> ReLU ----
    h = jnp.dot(h.astype(w_dtype), w2_ref[...], preferred_element_type=jnp.float32) + b2
    h = ln_relu(h, g2, be2)

    # ---- Linear 3 (full-width out_ch block; contiguous, unpadded HBM writeback) ----
    out = jnp.dot(h.astype(w_dtype), w3_ref[...], preferred_element_type=jnp.float32) + b3
    o_ref[...] = out.astype(o_ref.dtype)


def _pick_tile_n(n, tile_n):
    if tile_n is not None:
        return max(8, _round_up(tile_n, 8))
    target = 4096                      # 2-4K rows amortize the ~0.35us/grid-step overhead
    if n <= 8:
        return 8
    # >=2 grid steps (v7x has 2 TensorCores sharding the parallel row axis), and the
    # tile is fitted to N so row-padding waste stays <= 8 rows per step.
    steps = max(2, -(-n // target))
    return max(8, _round_up(-(-n // steps), 8))


def _vmem_limit_bytes(tile_n, in_ch, hidden, out_ch, slab_p, w_itemsize, out_itemsize):
    def tile_bytes(r, c, itemsize):
        return _round_up(r, 8) * _round_up(c, LANE) * itemsize
    est = 2 * tile_bytes(tile_n, in_ch, 4)                 # x, double-buffered
    est += 2 * tile_bytes(tile_n, out_ch, out_itemsize)    # out, double-buffered
    est += 2 * (tile_bytes(in_ch, hidden, w_itemsize)      # weights (assume 2 bufs worst case)
                + tile_bytes(hidden, hidden, w_itemsize)
                + tile_bytes(hidden, out_ch, w_itemsize)
                + 8 * slab_p * 4)
    est += 4 * tile_bytes(tile_n, hidden, 4)               # f32 activation temporaries
    # Floor at 32 MiB (above the 16/32 MiB scoped defaults); only grows when the
    # footprint needs it, capped below v5e/v6e's 128 MiB physical VMEM.
    return int(min(max(2 * est, 32 * 2**20), 96 * 2**20))


def finalpred_mlp(x, params, *, tile_n=None, out_dtype=None):
    """x: [N, in_channels]. params: dict from init_params (weights may be bf16).
    out_dtype: output storage dtype (defaults to x.dtype); pass jnp.bfloat16 on the
    bf16-weight path to halve the dominant HBM store stream if downstream accepts it."""
    N, in_ch = x.shape
    hidden = params["w1"].shape[1]
    out_ch = params["w3"].shape[1]
    w_dtype = params["w1"].dtype
    if out_dtype is None:
        out_dtype = x.dtype

    tile_n = _pick_tile_n(N, tile_n)
    n_pad = _round_up(N, tile_n)
    if n_pad != N:
        # LN is per-row; padded rows are independent and sliced away afterwards.
        x = jnp.pad(x, ((0, n_pad - N), (0, 0)))

    # Pack the seven small vectors into one (8, P) f32 slab -> one BlockSpec / DMA.
    P = _round_up(max(hidden, out_ch), LANE)
    slab = jnp.zeros((8, P), jnp.float32)
    slab = slab.at[0, :hidden].set(params["b1"].astype(jnp.float32))
    slab = slab.at[1, :hidden].set(params["g1"].astype(jnp.float32))
    slab = slab.at[2, :hidden].set(params["be1"].astype(jnp.float32))
    slab = slab.at[3, :hidden].set(params["b2"].astype(jnp.float32))
    slab = slab.at[4, :hidden].set(params["g2"].astype(jnp.float32))
    slab = slab.at[5, :hidden].set(params["be2"].astype(jnp.float32))
    slab = slab.at[6, :out_ch].set(params["b3"].astype(jnp.float32))

    grid = (n_pad // tile_n,)
    row_map = lambda i: (i, 0)
    rep_map = lambda i: (0, 0)

    vmem_limit = _vmem_limit_bytes(
        tile_n, in_ch, hidden, out_ch, P,
        jnp.dtype(w_dtype).itemsize, jnp.dtype(out_dtype).itemsize)

    def run(single_buffer_weights):
        # Grid-invariant operands (constant index_map) only need one buffer; default
        # double-buffering would hold 2x copies of the weights resident in VMEM.
        wkw = {"pipeline_mode": pl.Buffered(1)} if single_buffer_weights else {}
        return pl.pallas_call(
            finalpred_mlp_kernel,
            out_shape=jax.ShapeDtypeStruct((n_pad, out_ch), out_dtype),
            grid_spec=pltpu.PrefetchScalarGridSpec(
                num_scalar_prefetch=0,
                grid=grid,
                in_specs=[
                    pl.BlockSpec((tile_n, in_ch), row_map),           # x (row-tiled)
                    pl.BlockSpec((in_ch, hidden), rep_map, **wkw),    # w1 (resident)
                    pl.BlockSpec((hidden, hidden), rep_map, **wkw),   # w2 (resident)
                    pl.BlockSpec((hidden, out_ch), rep_map, **wkw),   # w3 (resident)
                    pl.BlockSpec((8, P), rep_map, **wkw),             # packed b/gamma/beta
                ],
                # Full out_ch width (== array dim): unpadded, contiguous HBM stores,
                # no post-kernel column slice.
                out_specs=pl.BlockSpec((tile_n, out_ch), row_map),
            ),
            compiler_params=pltpu.CompilerParams(
                dimension_semantics=("parallel",),
                vmem_limit_bytes=vmem_limit),
        )(x, params["w1"], params["w2"], params["w3"], slab)

    try:
        out = run(True)
    except Exception:
        # Some jax versions reject pl.Buffered(1) on pallas_call BlockSpecs; default
        # double buffering is functionally identical, just 2x weight VMEM.
        out = run(False)

    return out if n_pad == N else out[:N]


def init_params(key, in_channels, out_channels, hidden_unit):
    """PyTorch-style Linear init (uniform +/- 1/sqrt(fan_in)); LN affine = 1/0.
    Linear weights are stored pre-transposed as [in, out]."""
    ks = jax.random.split(key, 6)

    def lin(kw, kb, fan_in, fan_out):
        bound = 1.0 / jnp.sqrt(fan_in)
        w = jax.random.uniform(kw, (fan_in, fan_out), jnp.float32, -bound, bound)
        b = jax.random.uniform(kb, (fan_out,), jnp.float32, -bound, bound)
        return w, b

    w1, b1 = lin(ks[0], ks[1], in_channels, hidden_unit)
    w2, b2 = lin(ks[2], ks[3], hidden_unit, hidden_unit)
    w3, b3 = lin(ks[4], ks[5], hidden_unit, out_channels)
    return {
        "w1": w1, "b1": b1,
        "g1": jnp.ones((hidden_unit,), jnp.float32),
        "be1": jnp.zeros((hidden_unit,), jnp.float32),
        "w2": w2, "b2": b2,
        "g2": jnp.ones((hidden_unit,), jnp.float32),
        "be2": jnp.zeros((hidden_unit,), jnp.float32),
        "w3": w3, "b3": b3,
    }


def finalpred_mlp_ref(x, p):
    """Pure-JAX f32 reference for correctness check."""
    def ln(h, g, b):
        mu = jnp.mean(h, axis=-1, keepdims=True)
        var = jnp.mean((h - mu) ** 2, axis=-1, keepdims=True)
        return (h - mu) * jax.lax.rsqrt(var + LN_EPS) * g + b

    w1 = p["w1"].astype(jnp.float32)
    w2 = p["w2"].astype(jnp.float32)
    w3 = p["w3"].astype(jnp.float32)
    h = jnp.maximum(ln(x @ w1 + p["b1"], p["g1"], p["be1"]), 0.0)
    h = jnp.maximum(ln(h @ w2 + p["b2"], p["g2"], p["be2"]), 0.0)
    return h @ w3 + p["b3"]


if __name__ == "__main__":
    key = jax.random.PRNGKey(0)
    k_x, k_p, k_x2 = jax.random.split(key, 3)

    in_channels, hidden_unit, out_channels = 16, 32, 4
    params = init_params(k_p, in_channels, out_channels, hidden_unit)

    # Small batch (toy shape consistent with the module).
    x_small = jax.random.normal(k_x, (8, in_channels), jnp.float32)
    out_small = jax.block_until_ready(finalpred_mlp(x_small, params))
    ref_small = finalpred_mlp_ref(x_small, params)
    assert out_small.shape == (8, out_channels)
    assert jnp.allclose(out_small, ref_small, atol=1e-4, rtol=1e-4), "f32 small mismatch"

    # Larger, non-divisible batch: default tiling -> 2 grid steps of 504 rows
    # (both v7x cores get work), 8 padded rows, unpadded out_ch-wide stores.
    x_big = jax.random.normal(k_x2, (1000, in_channels), jnp.float32)
    out_big = jax.block_until_ready(finalpred_mlp(x_big, params))
    ref_big = finalpred_mlp_ref(x_big, params)
    assert out_big.shape == (1000, out_channels)
    assert jnp.allclose(out_big, ref_big, atol=1e-4, rtol=1e-4), "f32 big mismatch"

    # Explicit small tile: exercises a longer grid (8 steps) + last-tile padding.
    out_tiled = jax.block_until_ready(finalpred_mlp(x_big, params, tile_n=128))
    assert jnp.allclose(out_tiled, ref_big, atol=1e-4, rtol=1e-4), "tiled mismatch"

    # bf16 weights (v5e-friendly MXU path) + bf16 output store; f32 accumulation
    # and f32 LayerNorm inside the kernel.
    params_bf16 = {k: (v.astype(jnp.bfloat16) if k in ("w1", "w2", "w3") else v)
                   for k, v in params.items()}
    out_bf16 = jax.block_until_ready(
        finalpred_mlp(x_big, params_bf16, out_dtype=jnp.bfloat16))
    assert out_bf16.dtype == jnp.bfloat16 and out_bf16.shape == (1000, out_channels)
    assert jnp.allclose(out_bf16.astype(jnp.float32), ref_big, atol=0.1, rtol=0.1), \
        "bf16 path mismatch"

    print("KERNEL_OK")
</pallas_src>

<mosaic_0001>
module attributes {stable_mosaic.version = 11 : i64} {
  func.func @finalpred_mlp_kernel(%arg0: i32, %arg1: memref<8x16xf32, #tpu.memory_space<vmem>>, %arg2: memref<16x32xf32, #tpu.memory_space<vmem>>, %arg3: memref<32x32xf32, #tpu.memory_space<vmem>>, %arg4: memref<32x4xf32, #tpu.memory_space<vmem>>, %arg5: memref<8x128xf32, #tpu.memory_space<vmem>>, %arg6: memref<8x4xf32, #tpu.memory_space<vmem>>) attributes {dimension_semantics = [#tpu.dimension_semantics<parallel>], iteration_bounds = array<i64: 1>, scalar_prefetch = 0 : i64, scratch_operands = 0 : i64, tpu.core_type = #tpu.core_type<tc>, window_params = [{transform_indices = @transform_0, window_bounds = array<i64: 8, 16>}, {pipeline_mode = #tpu.pipeline_mode<synchronous>, transform_indices = @transform_1, window_bounds = array<i64: 16, 32>}, {pipeline_mode = #tpu.pipeline_mode<synchronous>, transform_indices = @transform_2, window_bounds = array<i64: 32, 32>}, {pipeline_mode = #tpu.pipeline_mode<synchronous>, transform_indices = @transform_3, window_bounds = array<i64: 32, 4>}, {pipeline_mode = #tpu.pipeline_mode<synchronous>, transform_indices = @transform_4, window_bounds = array<i64: 8, 128>}, {transform_indices = @transform_5, window_bounds = array<i64: 8, 4>}]} {
    %c0 = arith.constant 0 : index
    %c0_0 = arith.constant 0 : index
    %0 = vector.load %arg5[%c0, %c0_0] : memref<8x128xf32, #tpu.memory_space<vmem>>, vector<1x32xf32>
    %c1 = arith.constant 1 : index
    %c0_1 = arith.constant 0 : index
    %1 = vector.load %arg5[%c1, %c0_1] : memref<8x128xf32, #tpu.memory_space<vmem>>, vector<1x32xf32>
    %c2 = arith.constant 2 : index
    %c0_2 = arith.constant 0 : index
    %2 = vector.load %arg5[%c2, %c0_2] : memref<8x128xf32, #tpu.memory_space<vmem>>, vector<1x32xf32>
    %c3 = arith.constant 3 : index
    %c0_3 = arith.constant 0 : index
    %3 = vector.load %arg5[%c3, %c0_3] : memref<8x128xf32, #tpu.memory_space<vmem>>, vector<1x32xf32>
    %c4 = arith.constant 4 : index
    %c0_4 = arith.constant 0 : index
    %4 = vector.load %arg5[%c4, %c0_4] : memref<8x128xf32, #tpu.memory_space<vmem>>, vector<1x32xf32>
    %c5 = arith.constant 5 : index
    %c0_5 = arith.constant 0 : index
    %5 = vector.load %arg5[%c5, %c0_5] : memref<8x128xf32, #tpu.memory_space<vmem>>, vector<1x32xf32>
    %c6 = arith.constant 6 : index
    %c0_6 = arith.constant 0 : index
    %6 = vector.load %arg5[%c6, %c0_6] : memref<8x128xf32, #tpu.memory_space<vmem>>, vector<1x4xf32>
    %c0_7 = arith.constant 0 : index
    %c0_8 = arith.constant 0 : index
    %7 = vector.load %arg1[%c0_7, %c0_8] : memref<8x16xf32, #tpu.memory_space<vmem>>, vector<8x16xf32>
    %c0_9 = arith.constant 0 : index
    %c0_10 = arith.constant 0 : index
    %8 = vector.load %arg2[%c0_9, %c0_10] : memref<16x32xf32, #tpu.memory_space<vmem>>, vector<16x32xf32>
    %cst = arith.constant dense<0.000000e+00> : vector<8x32xf32>
    %9 = tpu.matmul %7, %8, %cst {dimension_numbers = #tpu.dot_dimension_numbers<[1], [0], [0], [1], [0, 0, 1, 1], [], []>} : vector<8x16xf32>, vector<16x32xf32>, vector<8x32xf32> -> vector<8x32xf32>
    %10 = vector.broadcast %0 : vector<1x32xf32> to vector<8x32xf32>
    %11 = arith.addf %9, %10 : vector<8x32xf32>
    %cst_11 = arith.constant dense<0.000000e+00> : vector<8xf32>
    %12 = vector.multi_reduction <add>, %11, %cst_11 [1] : vector<8x32xf32> to vector<8xf32>
    %13 = vector.shape_cast %12 : vector<8xf32> to vector<8x1xf32>
    %cst_12 = arith.constant 3.125000e-02 : f32
    %14 = vector.broadcast %cst_12 : f32 to vector<8x1xf32>
    %15 = arith.mulf %13, %14 : vector<8x1xf32>
    %16 = vector.broadcast %15 : vector<8x1xf32> to vector<8x32xf32>
    %17 = arith.subf %11, %16 : vector<8x32xf32>
    %18 = arith.mulf %17, %17 : vector<8x32xf32>
    %cst_13 = arith.constant dense<0.000000e+00> : vector<8xf32>
    %19 = vector.multi_reduction <add>, %18, %cst_13 [1] : vector<8x32xf32> to vector<8xf32>
    %20 = vector.shape_cast %19 : vector<8xf32> to vector<8x1xf32>
    %cst_14 = arith.constant 3.125000e-02 : f32
    %21 = vector.broadcast %cst_14 : f32 to vector<8x1xf32>
    %22 = arith.mulf %20, %21 : vector<8x1xf32>
    %cst_15 = arith.constant 9.99999974E-6 : f32
    %23 = vector.broadcast %cst_15 : f32 to vector<8x1xf32>
    %24 = arith.addf %22, %23 : vector<8x1xf32>
    %25 = math.rsqrt %24 : vector<8x1xf32>
    %26 = vector.broadcast %1 : vector<1x32xf32> to vector<8x32xf32>
    %27 = vector.broadcast %25 : vector<8x1xf32> to vector<8x32xf32>
    %28 = arith.mulf %26, %27 : vector<8x32xf32>
    %29 = arith.mulf %17, %28 : vector<8x32xf32>
    %30 = vector.broadcast %2 : vector<1x32xf32> to vector<8x32xf32>
    %31 = arith.addf %29, %30 : vector<8x32xf32>
    %cst_16 = arith.constant 0.000000e+00 : f32
    %32 = vector.broadcast %cst_16 : f32 to vector<8x32xf32>
    %33 = arith.maximumf %31, %32 : vector<8x32xf32>
    %c0_17 = arith.constant 0 : index
    %c0_18 = arith.constant 0 : index
    %34 = vector.load %arg3[%c0_17, %c0_18] : memref<32x32xf32, #tpu.memory_space<vmem>>, vector<32x32xf32>
    %cst_19 = arith.constant dense<0.000000e+00> : vector<8x32xf32>
    %35 = tpu.matmul %33, %34, %cst_19 {dimension_numbers = #tpu.dot_dimension_numbers<[1], [0], [0], [1], [0, 0, 1, 1], [], []>} : vector<8x32xf32>, vector<32x32xf32>, vector<8x32xf32> -> vector<8x32xf32>
    %36 = vector.broadcast %3 : vector<1x32xf32> to vector<8x32xf32>
    %37 = arith.addf %35, %36 : vector<8x32xf32>
    %cst_20 = arith.constant dense<0.000000e+00> : vector<8xf32>
    %38 = vector.multi_reduction <add>, %37, %cst_20 [1] : vector<8x32xf32> to vector<8xf32>
    %39 = vector.shape_cast %38 : vector<8xf32> to vector<8x1xf32>
    %cst_21 = arith.constant 3.125000e-02 : f32
    %40 = vector.broadcast %cst_21 : f32 to vector<8x1xf32>
    %41 = arith.mulf %39, %40 : vector<8x1xf32>
    %42 = vector.broadcast %41 : vector<8x1xf32> to vector<8x32xf32>
    %43 = arith.subf %37, %42 : vector<8x32xf32>
    %44 = arith.mulf %43, %43 : vector<8x32xf32>
    %cst_22 = arith.constant dense<0.000000e+00> : vector<8xf32>
    %45 = vector.multi_reduction <add>, %44, %cst_22 [1] : vector<8x32xf32> to vector<8xf32>
    %46 = vector.shape_cast %45 : vector<8xf32> to vector<8x1xf32>
    %cst_23 = arith.constant 3.125000e-02 : f32
    %47 = vector.broadcast %cst_23 : f32 to vector<8x1xf32>
    %48 = arith.mulf %46, %47 : vector<8x1xf32>
    %cst_24 = arith.constant 9.99999974E-6 : f32
    %49 = vector.broadcast %cst_24 : f32 to vector<8x1xf32>
    %50 = arith.addf %48, %49 : vector<8x1xf32>
    %51 = math.rsqrt %50 : vector<8x1xf32>
    %52 = vector.broadcast %4 : vector<1x32xf32> to vector<8x32xf32>
    %53 = vector.broadcast %51 : vector<8x1xf32> to vector<8x32xf32>
    %54 = arith.mulf %52, %53 : vector<8x32xf32>
    %55 = arith.mulf %43, %54 : vector<8x32xf32>
    %56 = vector.broadcast %5 : vector<1x32xf32> to vector<8x32xf32>
    %57 = arith.addf %55, %56 : vector<8x32xf32>
    %cst_25 = arith.constant 0.000000e+00 : f32
    %58 = vector.broadcast %cst_25 : f32 to vector<8x32xf32>
    %59 = arith.maximumf %57, %58 : vector<8x32xf32>
    %c0_26 = arith.constant 0 : index
    %c0_27 = arith.constant 0 : index
    %60 = vector.load %arg4[%c0_26, %c0_27] : memref<32x4xf32, #tpu.memory_space<vmem>>, vector<32x4xf32>
    %cst_28 = arith.constant dense<0.000000e+00> : vector<8x4xf32>
    %61 = tpu.matmul %59, %60, %cst_28 {dimension_numbers = #tpu.dot_dimension_numbers<[1], [0], [0], [1], [0, 0, 1, 1], [], []>} : vector<8x32xf32>, vector<32x4xf32>, vector<8x4xf32> -> vector<8x4xf32>
    %62 = vector.broadcast %6 : vector<1x4xf32> to vector<8x4xf32>
    %63 = arith.addf %61, %62 : vector<8x4xf32>
    %c0_29 = arith.constant 0 : index
    %c0_30 = arith.constant 0 : index
    %64 = vector.load %arg6[%c0_29, %c0_30] : memref<8x4xf32, #tpu.memory_space<vmem>>, vector<8x4xf32>
    tpu.vector_store %arg6[%c0_29, %c0_30], %63 {strides = array<i32>} : memref<8x4xf32, #tpu.memory_space<vmem>>, vector<8x4xf32>,
    return
  }
  func.func @transform_0(%arg0: i32) -> (i32, i32) {
    %c0_i32 = arith.constant 0 : i32
    %c0_i32_0 = arith.constant 0 : i32
    return %arg0, %c0_i32 : i32, i32
  }
  func.func @transform_1(%arg0: i32) -> (i32, i32) {
    %c0_i32 = arith.constant 0 : i32
    %c0_i32_0 = arith.constant 0 : i32
    %c0_i32_1 = arith.constant 0 : i32
    return %c0_i32, %c0_i32_0 : i32, i32
  }
  func.func @transform_2(%arg0: i32) -> (i32, i32) {
    %c0_i32 = arith.constant 0 : i32
    %c0_i32_0 = arith.constant 0 : i32
    %c0_i32_1 = arith.constant 0 : i32
    return %c0_i32, %c0_i32_0 : i32, i32
  }
  func.func @transform_3(%arg0: i32) -> (i32, i32) {
    %c0_i32 = arith.constant 0 : i32
    %c0_i32_0 = arith.constant 0 : i32
    %c0_i32_1 = arith.constant 0 : i32
    return %c0_i32, %c0_i32_0 : i32, i32
  }
  func.func @transform_4(%arg0: i32) -> (i32, i32) {
    %c0_i32 = arith.constant 0 : i32
    %c0_i32_0 = arith.constant 0 : i32
    %c0_i32_1 = arith.constant 0 : i32
    return %c0_i32, %c0_i32_0 : i32, i32
  }
  func.func @transform_5(%arg0: i32) -> (i32, i32) {
    %c0_i32 = arith.constant 0 : i32
    %c0_i32_0 = arith.constant 0 : i32
    return %arg0, %c0_i32 : i32, i32
  }
}

module attributes {stable_mosaic.version = 11 : i64} {
  func.func @finalpred_mlp_kernel(%arg0: i32, %arg1: memref<8x16xf32, #tpu.memory_space<vmem>>, %arg2: memref<16x32xf32, #tpu.memory_space<vmem>>, %arg3: memref<32x32xf32, #tpu.memory_space<vmem>>, %arg4: memref<32x4xf32, #tpu.memory_space<vmem>>, %arg5: memref<8x128xf32, #tpu.memory_space<vmem>>, %arg6: memref<8x4xf32, #tpu.memory_space<vmem>>) attributes {dimension_semantics = [#tpu.dimension_semantics<parallel>], iteration_bounds = array<i64: 1>, scalar_prefetch = 0 : i64, scratch_operands = 0 : i64, tpu.core_type = #tpu.core_type<tc>, window_params = [{transform_indices = @transform_0, window_bounds = array<i64: 8, 16>}, {pipeline_mode = #tpu.pipeline_mode<synchronous>, transform_indices = @transform_1, window_bounds = array<i64: 16, 32>}, {pipeline_mode = #tpu.pipeline_mode<synchronous>, transform_indices = @transform_2, window_bounds = array<i64: 32, 32>}, {pipeline_mode = #tpu.pipeline_mode<synchronous>, transform_indices = @transform_3, window_bounds = array<i64: 32, 4>}, {pipeline_mode = #tpu.pipeline_mode<synchronous>, transform_indices = @transform_4, window_bounds = array<i64: 8, 128>}, {transform_indices = @transform_5, window_bounds = array<i64: 8, 4>}]} {
    %c0 = arith.constant 0 : index
    %c0_0 = arith.constant 0 : index
    %0 = vector.load %arg5[%c0, %c0_0] : memref<8x128xf32, #tpu.memory_space<vmem>>, vector<1x32xf32>
    %c1 = arith.constant 1 : index
    %c0_1 = arith.constant 0 : index
    %1 = vector.load %arg5[%c1, %c0_1] : memref<8x128xf32, #tpu.memory_space<vmem>>, vector<1x32xf32>
    %c2 = arith.constant 2 : index
    %c0_2 = arith.constant 0 : index
    %2 = vector.load %arg5[%c2, %c0_2] : memref<8x128xf32, #tpu.memory_space<vmem>>, vector<1x32xf32>
    %c3 = arith.constant 3 : index
    %c0_3 = arith.constant 0 : index
    %3 = vector.load %arg5[%c3, %c0_3] : memref<8x128xf32, #tpu.memory_space<vmem>>, vector<1x32xf32>
    %c4 = arith.constant 4 : index
    %c0_4 = arith.constant 0 : index
    %4 = vector.load %arg5[%c4, %c0_4] : memref<8x128xf32, #tpu.memory_space<vmem>>, vector<1x32xf32>
    %c5 = arith.constant 5 : index
    %c0_5 = arith.constant 0 : index
    %5 = vector.load %arg5[%c5, %c0_5] : memref<8x128xf32, #tpu.memory_space<vmem>>, vector<1x32xf32>
    %c6 = arith.constant 6 : index
    %c0_6 = arith.constant 0 : index
    %6 = vector.load %arg5[%c6, %c0_6] : memref<8x128xf32, #tpu.memory_space<vmem>>, vector<1x4xf32>
    %c0_7 = arith.constant 0 : index
    %c0_8 = arith.constant 0 : index
    %7 = vector.load %arg1[%c0_7, %c0_8] : memref<8x16xf32, #tpu.memory_space<vmem>>, vector<8x16xf32>
    %c0_9 = arith.constant 0 : index
    %c0_10 = arith.constant 0 : index
    %8 = vector.load %arg2[%c0_9, %c0_10] : memref<16x32xf32, #tpu.memory_space<vmem>>, vector<16x32xf32>
    %cst = arith.constant dense<0.000000e+00> : vector<8x32xf32>
    %9 = tpu.matmul %7, %8, %cst {dimension_numbers = #tpu.dot_dimension_numbers<[1], [0], [0], [1], [0, 0, 1, 1], [], []>} : vector<8x16xf32>, vector<16x32xf32>, vector<8x32xf32> -> vector<8x32xf32>
    %10 = vector.broadcast %0 : vector<1x32xf32> to vector<8x32xf32>
    %11 = arith.addf %9, %10 : vector<8x32xf32>
    %cst_11 = arith.constant dense<0.000000e+00> : vector<8xf32>
    %12 = vector.multi_reduction <add>, %11, %cst_11 [1] : vector<8x32xf32> to vector<8xf32>
    %13 = vector.shape_cast %12 : vector<8xf32> to vector<8x1xf32>
    %cst_12 = arith.constant 3.125000e-02 : f32
    %14 = vector.broadcast %cst_12 : f32 to vector<8x1xf32>
    %15 = arith.mulf %13, %14 : vector<8x1xf32>
    %16 = vector.broadcast %15 : vector<8x1xf32> to vector<8x32xf32>
    %17 = arith.subf %11, %16 : vector<8x32xf32>
    %18 = arith.mulf %17, %17 : vector<8x32xf32>
    %cst_13 = arith.constant dense<0.000000e+00> : vector<8xf32>
    %19 = vector.multi_reduction <add>, %18, %cst_13 [1] : vector<8x32xf32> to vector<8xf32>
    %20 = vector.shape_cast %19 : vector<8xf32> to vector<8x1xf32>
    %cst_14 = arith.constant 3.125000e-02 : f32
    %21 = vector.broadcast %cst_14 : f32 to vector<8x1xf32>
    %22 = arith.mulf %20, %21 : vector<8x1xf32>
    %cst_15 = arith.constant 9.99999974E-6 : f32
    %23 = vector.broadcast %cst_15 : f32 to vector<8x1xf32>
    %24 = arith.addf %22, %23 : vector<8x1xf32>
    %25 = math.rsqrt %24 : vector<8x1xf32>
    %26 = vector.broadcast %1 : vector<1x32xf32> to vector<8x32xf32>
    %27 = vector.broadcast %25 : vector<8x1xf32> to vector<8x32xf32>
    %28 = arith.mulf %26, %27 : vector<8x32xf32>
    %29 = arith.mulf %17, %28 : vector<8x32xf32>
    %30 = vector.broadcast %2 : vector<1x32xf32> to vector<8x32xf32>
    %31 = arith.addf %29, %30 : vector<8x32xf32>
    %cst_16 = arith.constant 0.000000e+00 : f32
    %32 = vector.broadcast %cst_16 : f32 to vector<8x32xf32>
    %33 = arith.maximumf %31, %32 : vector<8x32xf32>
    %c0_17 = arith.constant 0 : index
    %c0_18 = arith.constant 0 : index
    %34 = vector.load %arg3[%c0_17, %c0_18] : memref<32x32xf32, #tpu.memory_space<vmem>>, vector<32x32xf32>
    %cst_19 = arith.constant dense<0.000000e+00> : vector<8x32xf32>
    %35 = tpu.matmul %33, %34, %cst_19 {dimension_numbers = #tpu.dot_dimension_numbers<[1], [0], [0], [1], [0, 0, 1, 1], [], []>} : vector<8x32xf32>, vector<32x32xf32>, vector<8x32xf32> -> vector<8x32xf32>
    %36 = vector.broadcast %3 : vector<1x32xf32> to vector<8x32xf32>
    %37 = arith.addf %35, %36 : vector<8x32xf32>
    %cst_20 = arith.constant dense<0.000000e+00> : vector<8xf32>
    %38 = vector.multi_reduction <add>, %37, %cst_20 [1] : vector<8x32xf32> to vector<8xf32>
    %39 = vector.shape_cast %38 : vector<8xf32> to vector<8x1xf32>
    %cst_21 = arith.constant 3.125000e-02 : f32
    %40 = vector.broadcast %cst_21 : f32 to vector<8x1xf32>
    %41 = arith.mulf %39, %40 : vector<8x1xf32>
    %42 = vector.broadcast %41 : vector<8x1xf32> to vector<8x32xf32>
    %43 = arith.subf %37, %42 : vector<8x32xf32>
    %44 = arith.mulf %43, %43 : vector<8x32xf32>
    %cst_22 = arith.constant dense<0.000000e+00> : vector<8xf32>
    %45 = vector.multi_reduction <add>, %44, %cst_22 [1] : vector<8x32xf32> to vector<8xf32>
    %46 = vector.shape_cast %45 : vector<8xf32> to vector<8x1xf32>
    %cst_23 = arith.constant 3.125000e-02 : f32
    %47 = vector.broadcast %cst_23 : f32 to vector<8x1xf32>
    %48 = arith.mulf %46, %47 : vector<8x1xf32>
    %cst_24 = arith.constant 9.99999974E-6 : f32
    %49 = vector.broadcast %cst_24 : f32 to vector<8x1xf32>
    %50 = arith.addf %48, %49 : vector<8x1xf32>
    %51 = math.rsqrt %50 : vector<8x1xf32>
    %52 = vector.broadcast %4 : vector<1x32xf32> to vector<8x32xf32>
    %53 = vector.broadcast %51 : vector<8x1xf32> to vector<8x32xf32>
    %54 = arith.mulf %52, %53 : vector<8x32xf32>
    %55 = arith.mulf %43, %54 : vector<8x32xf32>
    %56 = vector.broadcast %5 : vector<1x32xf32> to vector<8x32xf32>
    %57 = arith.addf %55, %56 : vector<8x32xf32>
    %cst_25 = arith.constant 0.000000e+00 : f32
    %58 = vector.broadcast %cst_25 : f32 to vector<8x32xf32>
    %59 = arith.maximumf %57, %58 : vector<8x32xf32>
    %c0_26 = arith.constant 0 : index
    %c0_27 = arith.constant 0 : index
    %60 = vector.load %arg4[%c0_26, %c0_27] : memref<32x4xf32, #tpu.memory_space<vmem>>, vector<32x4xf32>
    %cst_28 = arith.constant dense<0.000000e+00> : vector<8x4xf32>
    %61 = tpu.matmul %59, %60, %cst_28 {dimension_numbers = #tpu.dot_dimension_numbers<[1], [0], [0], [1], [0, 0, 1, 1], [], []>} : vector<8x32xf32>, vector<32x4xf32>, vector<8x4xf32> -> vector<8x4xf32>
    %62 = vector.broadcast %6 : vector<1x4xf32> to vector<8x4xf32>
    %63 = arith.addf %61, %62 : vector<8x4xf32>
    %c0_29 = arith.constant 0 : index
    %c0_30 = arith.constant 0 : index
    %64 = vector.load %arg6[%c0_29, %c0_30] : memref<8x4xf32, #tpu.memory_space<vmem>>, vector<8x4xf32>
    tpu.vector_store %arg6[%c0_29, %c0_30], %63 {strides = array<i32>} : memref<8x4xf32, #tpu.memory_space<vmem>>, vector<8x4xf32>,
    return
  }
  func.func @transform_0(%arg0: i32) -> (i32, i32) {
    %c0_i32 = arith.constant 0 : i32
    %c0_i32_0 = arith.constant 0 : i32
    return %arg0, %c0_i32 : i32, i32
  }
  func.func @transform_1(%arg0: i32) -> (i32, i32) {
    %c0_i32 = arith.constant 0 : i32
    %c0_i32_0 = arith.constant 0 : i32
    %c0_i32_1 = arith.constant 0 : i32
    return %c0_i32, %c0_i32_0 : i32, i32
  }
  func.func @transform_2(%arg0: i32) -> (i32, i32) {
    %c0_i32 = arith.constant 0 : i32
    %c0_i32_0 = arith.constant 0 : i32
    %c0_i32_1 = arith.constant 0 : i32
    return %c0_i32, %c0_i32_0 : i32, i32
  }
  func.func @transform_3(%arg0: i32) -> (i32, i32) {
    %c0_i32 = arith.constant 0 : i32
    %c0_i32_0 = arith.constant 0 : i32
    %c0_i32_1 = arith.constant 0 : i32
    return %c0_i32, %c0_i32_0 : i32, i32
  }
  func.func @transform_4(%arg0: i32) -> (i32, i32) {
    %c0_i32 = arith.constant 0 : i32
    %c0_i32_0 = arith.constant 0 : i32
    %c0_i32_1 = arith.constant 0 : i32
    return %c0_i32, %c0_i32_0 : i32, i32
  }
  func.func @transform_5(%arg0: i32) -> (i32, i32) {
    %c0_i32 = arith.constant 0 : i32
    %c0_i32_0 = arith.constant 0 : i32
    return %arg0, %c0_i32 : i32, i32
  }
}

</mosaic_0001>

<llo_original>
// kernel: tpu_custom_call.1
$region0: #{tpu_custom_call.1}
  #allocation0 [shape = 'u32[]', space=smem, size = 0x4, offset = 0x4, fixed_abs, tag = 'smem constant byte address 0x4 - core index']
  #allocation1 [shape = 'u32[144,128]{1,0:T(1,128)}', space=vmem, size = 0x12000, scoped, tag = 'internal scratch']
  %s0 = inlined_call_operand.vmem [shape: f32[8,16], index: 0, kind: input, shape index: {}]
  %s1 = inlined_call_operand.hbm [shape: f32[16,32], index: 1, kind: input, shape index: {}]
  %s2 = inlined_call_operand.vmem [shape: f32[32,32], index: 2, kind: input, shape index: {}]
  %s3 = inlined_call_operand.vmem [shape: f32[32,4], index: 3, kind: input, shape index: {}]
  %s4 = inlined_call_operand.vmem [shape: f32[8,128], index: 4, kind: input, shape index: {}]
  %s5 = inlined_call_operand.vmem [shape: f32[8,4], index: 5, kind: output, shape index: {}]
  %s6 = sld [smem:[#allocation0]]
  $region34: #{tpu_custom_call.1} parent=0
    _
  %s8 = ssub.s32 1, %s6
  %s9 = scalar_select 0, %s8, %s6
  $region1: #{tpu_custom_call.1} parent=0
    #allocation2 [shape = 'u8[8192]{0}', space=vmem, size = 0x2000, scoped, tag = 'input window, operand 1, single buffered']
    #allocation3 [shape = 's32[1]{0}', space=sflag, size = 0x4, scoped, tag = 'scoped memory for tpu_custom_call.1']
    %10 = vsyncpa [#allocation3], 0
    // Predicated region
    $region2: #{tpu_custom_call.1} parent=1 // pred_check
      _
    $region3: #{tpu_custom_call.1} parent=1 // pred_check_branch
      %12 = sbr.rel (0) target = $region5
    $region4: #{tpu_custom_call.1} parent=1 // pred_region
      _
    $region5: #{tpu_custom_call.1} parent=1 // pred_fallthru
      _
    // Predicated region
    $region6: #{tpu_custom_call.1} parent=1 // pred_check
      _
    $region7: #{tpu_custom_call.1} parent=1 // pred_check_branch
      %14 = sbr.rel (0) target = $region9
    $region8: #{tpu_custom_call.1} parent=1 // pred_region
      %s16 = ssub.s32 256, 256
      %17 = vsyncadd [#allocation3], %s16
      %s18 = sshll.u32 [#allocation2], 4
      %s19 = int_to_ptr.vmem [resolvable:$true] %s18
      %24 = dma.hbm_to_vmem [thread:$0]  %s1, 256, %s19, [#allocation3], 128, 128, 8
    $region9: #{tpu_custom_call.1} parent=1 // pred_fallthru
      _
    // Predicated region
    $region10: #{tpu_custom_call.1} parent=1 // pred_check
      _
    $region11: #{tpu_custom_call.1} parent=1 // pred_check_branch
      %26 = sbr.rel (0) target = $region13
    $region12: #{tpu_custom_call.1} parent=1 // pred_region
      _
    $region13: #{tpu_custom_call.1} parent=1 // pred_fallthru
      _
    // Predicated region
    $region14: #{tpu_custom_call.1} parent=1 // pred_check
      _
    $region15: #{tpu_custom_call.1} parent=1 // pred_check_branch
      %28 = sbr.rel (0) target = $region17
    $region16: #{tpu_custom_call.1} parent=1 // pred_region
      _
    $region17: #{tpu_custom_call.1} parent=1 // pred_fallthru
      _
    // Predicated region
    $region18: #{tpu_custom_call.1} parent=1 // pred_check
      _
    $region19: #{tpu_custom_call.1} parent=1 // pred_check_branch
      %30 = sbr.rel (0) target = $region21
    $region20: #{tpu_custom_call.1} parent=1 // pred_region
      _
    $region21: #{tpu_custom_call.1} parent=1 // pred_fallthru
      _
    // Predicated region
    $region22: #{tpu_custom_call.1} parent=1 // pred_check
      _
    $region23: #{tpu_custom_call.1} parent=1 // pred_check_branch
      %32 = sbr.rel (0) target = $region25
    $region24: #{tpu_custom_call.1} parent=1 // pred_region
      %33 = dma.done [#allocation3], 256
    $region25: #{tpu_custom_call.1} parent=1 // pred_fallthru
      _
    %v34 = vld [vmem:[%s4] sm:$0x1]
    %v35 = vld [vmem:[%s4 + $0x1] sm:$0x1]
    %v36 = vld [vmem:[%s4 + $0x2] sm:$0x1]
    %v37 = vld [vmem:[%s4 + $0x3] sm:$0x1]
    %v38 = vld [vmem:[%s4 + $0x4] sm:$0x1]
    %v39 = vld [vmem:[%s4 + $0x5] sm:$0x1]
    %v40 = vld [vmem:[%s4 + $0x6] sm:$0x1]
    %v41 = vld [vmem:[%s0] sm:$0xff]
    %v42 = vld [vmem:[#allocation2] sm:$0xff]
    %v43 = vld [vmem:[#allocation2 + $0x8] sm:$0xff]
    %v44 = vlaneseq
    %v45 = vshrl.u32 %v44, 7
    %v46 = vsub.s32 0, %v45
    %v47 = vrot.slane %v34, %v46
    %vm48 = vcmask 130048
    %v50 = vsel %vm48, %v41, 0
    %52 = vmatprep.subr.mxu0 0.0
    %53 = vmatpush1.msra.mxu0 %v42
    %54 = vmatprep.subr.mxu0 0.0
    %55 = vmatpush1.msra.mxu0 %v43
    %56 = vmatprep.subr.mxu0 0.0
    %57 = vmatpush1.msra.mxu0 0.0
    %58 = vmatprep.subr.mxu0 0.0
    %59 = vmatpush1.msra.mxu0 0.0
    %60 = vmatprep.subr.mxu0 0.0
    %61 = vmatpush1.msra.mxu0 0.0
    %62 = vmatprep.subr.mxu0 0.0
    %63 = vmatpush1.msra.mxu0 0.0
    %64 = vmatprep.subr.mxu0 0.0
    %65 = vmatpush1.msra.mxu0 0.0
    %66 = vmatprep.subr.mxu0 0.0
    %67 = vmatpush1.msra.mxu0 0.0
    %68 = vmatprep.subr.mxu0 0.0
    %69 = vmatpush1.msra.mxu0 0.0
    %70 = vmatprep.subr.mxu0 0.0
    %71 = vmatpush1.msra.mxu0 0.0
    %72 = vmatprep.subr.mxu0 0.0
    %73 = vmatpush1.msra.mxu0 0.0
    %74 = vmatprep.subr.mxu0 0.0
    %75 = vmatpush1.msra.mxu0 0.0
    %76 = vmatprep.subr.mxu0 0.0
    %77 = vmatpush1.msra.mxu0 0.0
    %78 = vmatprep.subr.mxu0 0.0
    %79 = vmatpush1.msra.mxu0 0.0
    %80 = vmatprep.subr.mxu0 0.0
    %81 = vmatpush1.msra.mxu0 0.0
    %82 = vmatprep.subr.mxu0 0.0
    %83 = vmatpush1.msra.mxu0 0.0
    %84 = vmatprep.subr.mxu0 0.0
    %85 = vmatpush1.msra.mxu0 0.0
    %86 = vmatprep.subr.mxu0 0.0
    %87 = vmatpush1.msra.mxu0 0.0
    %88 = vmatprep.subr.mxu0 0.0
    %89 = vmatpush1.msra.mxu0 0.0
    %90 = vmatprep.subr.mxu0 0.0
    %91 = vmatpush1.msra.mxu0 0.0
    %92 = vmatprep.subr.mxu0 0.0
    %93 = vmatpush1.msra.mxu0 0.0
    %94 = vmatprep.subr.mxu0 0.0
    %95 = vmatpush1.msra.mxu0 0.0
    %96 = vmatprep.subr.mxu0 0.0
    %97 = vmatpush1.msra.mxu0 0.0
    %98 = vmatprep.subr.mxu0 0.0
    %99 = vmatpush1.msra.mxu0 0.0
    %100 = vmatprep.subr.mxu0 0.0
    %101 = vmatpush1.msra.mxu0 0.0
    %102 = vmatprep.subr.mxu0 0.0
    %103 = vmatpush1.msra.mxu0 0.0
    %104 = vmatprep.subr.mxu0 0.0
    %105 = vmatpush1.msra.mxu0 0.0
    %106 = vmatprep.subr.mxu0 0.0
    %107 = vmatpush1.msra.mxu0 0.0
    %108 = vmatprep.subr.mxu0 0.0
    %109 = vmatpush1.msra.mxu0 0.0
    %110 = vmatprep.subr.mxu0 0.0
    %111 = vmatpush1.msra.mxu0 0.0
    %112 = vmatprep.subr.mxu0 0.0
    %113 = vmatpush1.msra.mxu0 0.0
    %114 = vmatprep.subr.mxu0 0.0
    %115 = vmatpush1.msra.mxu0 0.0
    %116 = vmatprep.mubr.f32.mxu0 0.0
    %117 = vmatmul.mubr.f32.gmra.mrb[0].mxu0 %v50
    %v118 = vpop.f32.mrb[0].mxu0
    %v119 = vadd.f32 %v47, %v118
    %v120 = vpop.f32.mrb[0].mxu0
    %121 = vdwg.mxu0
    %vm122 = vcmask 261120
    %v123 = vsel %vm122, %v119, 0.0
    %124 = vadd.xlane.f32.xlu0 %v123
    %v125 = vpop.xlane.xlu0 %124
    %v126 = vmul.f32 %v125, 0.03125
    %v127 = vsub.f32 %v119, %v126
    %v128 = vmul.f32 %v127, %v127
    %v129 = vsel %vm122, %v128, 0.0
    %130 = vadd.xlane.f32.xlu0 %v129
    %v131 = vpop.xlane.xlu0 %130
    %v132 = vmul.f32 %v131, 0.03125
    %v133 = vadd.f32 %v132, 1e-05
    %v134 = vrsqrt.pop %v133
    %v135 = vlaneseq
    %v136 = vshrl.u32 %v135, 7
    %v137 = vsub.s32 0, %v136
    %v138 = vrot.slane %v35, %v137
    %v139 = vmul.f32 %v138, %v134
    %v140 = vmul.f32 %v127, %v139
    %v141 = vlaneseq
    %v142 = vshrl.u32 %v141, 7
    %v143 = vsub.s32 0, %v142
    %v144 = vrot.slane %v36, %v143
    %v145 = vadd.f32 %v140, %v144
    %v146 = vmax.f32 %v145, 0.0
    %v147 = vld [vmem:[%s2] sm:$0xff]
    %v148 = vld [vmem:[%s2 + $0x8] sm:$0xff]
    %v149 = vld [vmem:[%s2 + $0x10] sm:$0xff]
    %v150 = vld [vmem:[%s2 + $0x18] sm:$0xff]
    %v151 = vlaneseq
    %v152 = vshrl.u32 %v151, 7
    %v153 = vsub.s32 0, %v152
    %v154 = vrot.slane %v37, %v153
    %v156 = vsel %vm122, %v146, 0
    %158 = vmatprep.subr.mxu0 0.0
    %159 = vmatpush1.msra.mxu0 %v147
    %160 = vmatprep.subr.mxu0 0.0
    %161 = vmatpush1.msra.mxu0 %v148
    %162 = vmatprep.subr.mxu0 0.0
    %163 = vmatpush1.msra.mxu0 %v149
    %164 = vmatprep.subr.mxu0 0.0
    %165 = vmatpush1.msra.mxu0 %v150
    %166 = vmatprep.subr.mxu0 0.0
    %167 = vmatpush1.msra.mxu0 0.0
    %168 = vmatprep.subr.mxu0 0.0
    %169 = vmatpush1.msra.mxu0 0.0
    %170 = vmatprep.subr.mxu0 0.0
    %171 = vmatpush1.msra.mxu0 0.0
    %172 = vmatprep.subr.mxu0 0.0
    %173 = vmatpush1.msra.mxu0 0.0
    %174 = vmatprep.subr.mxu0 0.0
    %175 = vmatpush1.msra.mxu0 0.0
    %176 = vmatprep.subr.mxu0 0.0
    %177 = vmatpush1.msra.mxu0 0.0
    %178 = vmatprep.subr.mxu0 0.0
    %179 = vmatpush1.msra.mxu0 0.0
    %180 = vmatprep.subr.mxu0 0.0
    %181 = vmatpush1.msra.mxu0 0.0
    %182 = vmatprep.subr.mxu0 0.0
    %183 = vmatpush1.msra.mxu0 0.0
    %184 = vmatprep.subr.mxu0 0.0
    %185 = vmatpush1.msra.mxu0 0.0
    %186 = vmatprep.subr.mxu0 0.0
    %187 = vmatpush1.msra.mxu0 0.0
    %188 = vmatprep.subr.mxu0 0.0
    %189 = vmatpush1.msra.mxu0 0.0
    %190 = vmatprep.subr.mxu0 0.0
    %191 = vmatpush1.msra.mxu0 0.0
    %192 = vmatprep.subr.mxu0 0.0
    %193 = vmatpush1.msra.mxu0 0.0
    %194 = vmatprep.subr.mxu0 0.0
    %195 = vmatpush1.msra.mxu0 0.0
    %196 = vmatprep.subr.mxu0 0.0
    %197 = vmatpush1.msra.mxu0 0.0
    %198 = vmatprep.subr.mxu0 0.0
    %199 = vmatpush1.msra.mxu0 0.0
    %200 = vmatprep.subr.mxu0 0.0
    %201 = vmatpush1.msra.mxu0 0.0
    %202 = vmatprep.subr.mxu0 0.0
    %203 = vmatpush1.msra.mxu0 0.0
    %204 = vmatprep.subr.mxu0 0.0
    %205 = vmatpush1.msra.mxu0 0.0
    %206 = vmatprep.subr.mxu0 0.0
    %207 = vmatpush1.msra.mxu0 0.0
    %208 = vmatprep.subr.mxu0 0.0
    %209 = vmatpush1.msra.mxu0 0.0
    %210 = vmatprep.subr.mxu0 0.0
    %211 = vmatpush1.msra.mxu0 0.0
    %212 = vmatprep.subr.mxu0 0.0
    %213 = vmatpush1.msra.mxu0 0.0
    %214 = vmatprep.subr.mxu0 0.0
    %215 = vmatpush1.msra.mxu0 0.0
    %216 = vmatprep.subr.mxu0 0.0
    %217 = vmatpush1.msra.mxu0 0.0
    %218 = vmatprep.subr.mxu0 0.0
    %219 = vmatpush1.msra.mxu0 0.0
    %220 = vmatprep.subr.mxu0 0.0
    %221 = vmatpush1.msra.mxu0 0.0
    %222 = vmatprep.mubr.f32.mxu0 0.0
    %223 = vmatmul.mubr.f32.gmra.mrb[0].mxu0 %v156
    %v224 = vpop.f32.mrb[0].mxu0
    %v225 = vadd.f32 %v154, %v224
    %v226 = vpop.f32.mrb[0].mxu0
    %227 = vdwg.mxu0
    %v228 = vsel %vm122, %v225, 0.0
    %229 = vadd.xlane.f32.xlu0 %v228
    %v230 = vpop.xlane.xlu0 %229
    %v231 = vmul.f32 %v230, 0.03125
    %v232 = vsub.f32 %v225, %v231
    %v233 = vmul.f32 %v232, %v232
    %v234 = vsel %vm122, %v233, 0.0
    %235 = vadd.xlane.f32.xlu0 %v234
    %v236 = vpop.xlane.xlu0 %235
    %v237 = vmul.f32 %v236, 0.03125
    %v238 = vadd.f32 %v237, 1e-05
    %v239 = vrsqrt.pop %v238
    %v240 = vlaneseq
    %v241 = vshrl.u32 %v240, 7
    %v242 = vsub.s32 0, %v241
    %v243 = vrot.slane %v38, %v242
    %v244 = vmul.f32 %v243, %v239
    %v245 = vmul.f32 %v232, %v244
    %v246 = vlaneseq
    %v247 = vshrl.u32 %v246, 7
    %v248 = vsub.s32 0, %v247
    %v249 = vrot.slane %v39, %v248
    %v250 = vadd.f32 %v245, %v249
    %v251 = vmax.f32 %v250, 0.0
    %v252 = vld [vmem:[%s3] sm:$0xff]
    %v253 = vld [vmem:[%s3 + $0x8] sm:$0xff]
    %v254 = vld [vmem:[%s3 + $0x10] sm:$0xff]
    %v255 = vld [vmem:[%s3 + $0x18] sm:$0xff]
    %v256 = vlaneseq
    %v257 = vshrl.u32 %v256, 7
    %v258 = vsub.s32 0, %v257
    %v259 = vrot.slane %v40, %v258
    %v261 = vsel %vm122, %v251, 0
    %263 = vmatprep.subr.mxu0 0.0
    %264 = vmatpush1.msra.mxu0 %v252
    %265 = vmatprep.subr.mxu0 0.0
    %266 = vmatpush1.msra.mxu0 %v253
    %267 = vmatprep.subr.mxu0 0.0
    %268 = vmatpush1.msra.mxu0 %v254
    %269 = vmatprep.subr.mxu0 0.0
    %270 = vmatpush1.msra.mxu0 %v255
    %271 = vmatprep.subr.mxu0 0.0
    %272 = vmatpush1.msra.mxu0 0.0
    %273 = vmatprep.subr.mxu0 0.0
    %274 = vmatpush1.msra.mxu0 0.0
    %275 = vmatprep.subr.mxu0 0.0
    %276 = vmatpush1.msra.mxu0 0.0
    %277 = vmatprep.subr.mxu0 0.0
    %278 = vmatpush1.msra.mxu0 0.0
    %279 = vmatprep.subr.mxu0 0.0
    %280 = vmatpush1.msra.mxu0 0.0
    %281 = vmatprep.subr.mxu0 0.0
    %282 = vmatpush1.msra.mxu0 0.0
    %283 = vmatprep.subr.mxu0 0.0
    %284 = vmatpush1.msra.mxu0 0.0
    %285 = vmatprep.subr.mxu0 0.0
    %286 = vmatpush1.msra.mxu0 0.0
    %287 = vmatprep.subr.mxu0 0.0
    %288 = vmatpush1.msra.mxu0 0.0
    %289 = vmatprep.subr.mxu0 0.0
    %290 = vmatpush1.msra.mxu0 0.0
    %291 = vmatprep.subr.mxu0 0.0
    %292 = vmatpush1.msra.mxu0 0.0
    %293 = vmatprep.subr.mxu0 0.0
    %294 = vmatpush1.msra.mxu0 0.0
    %295 = vmatprep.subr.mxu0 0.0
    %296 = vmatpush1.msra.mxu0 0.0
    %297 = vmatprep.subr.mxu0 0.0
    %298 = vmatpush1.msra.mxu0 0.0
    %299 = vmatprep.subr.mxu0 0.0
    %300 = vmatpush1.msra.mxu0 0.0
    %301 = vmatprep.subr.mxu0 0.0
    %302 = vmatpush1.msra.mxu0 0.0
    %303 = vmatprep.subr.mxu0 0.0
    %304 = vmatpush1.msra.mxu0 0.0
    %305 = vmatprep.subr.mxu0 0.0
    %306 = vmatpush1.msra.mxu0 0.0
    %307 = vmatprep.subr.mxu0 0.0
    %308 = vmatpush1.msra.mxu0 0.0
    %309 = vmatprep.subr.mxu0 0.0
    %310 = vmatpush1.msra.mxu0 0.0
    %311 = vmatprep.subr.mxu0 0.0
    %312 = vmatpush1.msra.mxu0 0.0
    %313 = vmatprep.subr.mxu0 0.0
    %314 = vmatpush1.msra.mxu0 0.0
    %315 = vmatprep.subr.mxu0 0.0
    %316 = vmatpush1.msra.mxu0 0.0
    %317 = vmatprep.subr.mxu0 0.0
    %318 = vmatpush1.msra.mxu0 0.0
    %319 = vmatprep.subr.mxu0 0.0
    %320 = vmatpush1.msra.mxu0 0.0
    %321 = vmatprep.subr.mxu0 0.0
    %322 = vmatpush1.msra.mxu0 0.0
    %323 = vmatprep.subr.mxu0 0.0
    %324 = vmatpush1.msra.mxu0 0.0
    %325 = vmatprep.subr.mxu0 0.0
    %326 = vmatpush1.msra.mxu0 0.0
    %327 = vmatprep.mubr.f32.mxu0 0.0
    %328 = vmatmul.mubr.f32.gmra.mrb[0].mxu0 %v261
    %v329 = vpop.f32.mrb[0].mxu0
    %v330 = vadd.f32 %v259, %v329
    %v331 = vpop.f32.mrb[0].mxu0
    %332 = vdwg.mxu0
    %vm333 = vcmask 31744
    %334 = vst.msk [vmem:[%s5] sm:$0xff] %vm333, %v330
    // Predicated region
    $region26: #{tpu_custom_call.1} parent=1 // pred_check
      _
    $region27: #{tpu_custom_call.1} parent=1 // pred_check_branch
      %336 = sbr.rel (0) target = $region29
    $region28: #{tpu_custom_call.1} parent=1 // pred_region
      _
    $region29: #{tpu_custom_call.1} parent=1 // pred_fallthru
      _
    // Predicated region
    $region30: #{tpu_custom_call.1} parent=1 // pred_check
      _
    $region31: #{tpu_custom_call.1} parent=1 // pred_check_branch
      %338 = sbr.rel (0) target = $region33
    $region32: #{tpu_custom_call.1} parent=1 // pred_region
      _
    $region33: #{tpu_custom_call.1} parent=1 // pred_fallthru
      _
    %339 = vsyncpa [#allocation3], 1

// kernel: tpu_custom_call.1
$region0: #{tpu_custom_call.1}
  #allocation0 [shape = 'u32[]', space=smem, size = 0x4, offset = 0x4, fixed_abs, tag = 'smem constant byte address 0x4 - core index']
  #allocation1 [shape = 'u32[144,128]{1,0:T(1,128)}', space=vmem, size = 0x12000, scoped, tag = 'internal scratch']
  %s0 = inlined_call_operand.vmem [shape: f32[8,16], index: 0, kind: input, shape index: {}]
  %s1 = inlined_call_operand.hbm [shape: f32[16,32], index: 1, kind: input, shape index: {}]
  %s2 = inlined_call_operand.vmem [shape: f32[32,32], index: 2, kind: input, shape index: {}]
  %s3 = inlined_call_operand.vmem [shape: f32[32,4], index: 3, kind: input, shape index: {}]
  %s4 = inlined_call_operand.vmem [shape: f32[8,128], index: 4, kind: input, shape index: {}]
  %s5 = inlined_call_operand.vmem [shape: f32[8,4], index: 5, kind: output, shape index: {}]
  %s6 = sld [smem:[#allocation0]]
  $region34: #{tpu_custom_call.1} parent=0
    _
  %s8 = ssub.s32 1, %s6
  %s9 = scalar_select 0, %s8, %s6
  $region1: #{tpu_custom_call.1} parent=0
    #allocation2 [shape = 'u8[8192]{0}', space=vmem, size = 0x2000, scoped, tag = 'input window, operand 1, single buffered']
    #allocation3 [shape = 's32[1]{0}', space=sflag, size = 0x4, scoped, tag = 'scoped memory for tpu_custom_call.1']
    %10 = vsyncpa [#allocation3], 0
    // Predicated region
    $region2: #{tpu_custom_call.1} parent=1 // pred_check
      _
    $region3: #{tpu_custom_call.1} parent=1 // pred_check_branch
      %12 = sbr.rel (0) target = $region5
    $region4: #{tpu_custom_call.1} parent=1 // pred_region
      _
    $region5: #{tpu_custom_call.1} parent=1 // pred_fallthru
      _
    // Predicated region
    $region6: #{tpu_custom_call.1} parent=1 // pred_check
      _
    $region7: #{tpu_custom_call.1} parent=1 // pred_check_branch
      %14 = sbr.rel (0) target = $region9
    $region8: #{tpu_custom_call.1} parent=1 // pred_region
      %s16 = ssub.s32 256, 256
      %17 = vsyncadd [#allocation3], %s16
      %s18 = sshll.u32 [#allocation2], 4
      %s19 = int_to_ptr.vmem [resolvable:$true] %s18
      %24 = dma.hbm_to_vmem [thread:$0]  %s1, 256, %s19, [#allocation3], 128, 128, 8
    $region9: #{tpu_custom_call.1} parent=1 // pred_fallthru
      _
    // Predicated region
    $region10: #{tpu_custom_call.1} parent=1 // pred_check
      _
    $region11: #{tpu_custom_call.1} parent=1 // pred_check_branch
      %26 = sbr.rel (0) target = $region13
    $region12: #{tpu_custom_call.1} parent=1 // pred_region
      _
    $region13: #{tpu_custom_call.1} parent=1 // pred_fallthru
      _
    // Predicated region
    $region14: #{tpu_custom_call.1} parent=1 // pred_check
      _
    $region15: #{tpu_custom_call.1} parent=1 // pred_check_branch
      %28 = sbr.rel (0) target = $region17
    $region16: #{tpu_custom_call.1} parent=1 // pred_region
      _
    $region17: #{tpu_custom_call.1} parent=1 // pred_fallthru
      _
    // Predicated region
    $region18: #{tpu_custom_call.1} parent=1 // pred_check
      _
    $region19: #{tpu_custom_call.1} parent=1 // pred_check_branch
      %30 = sbr.rel (0) target = $region21
    $region20: #{tpu_custom_call.1} parent=1 // pred_region
      _
    $region21: #{tpu_custom_call.1} parent=1 // pred_fallthru
      _
    // Predicated region
    $region22: #{tpu_custom_call.1} parent=1 // pred_check
      _
    $region23: #{tpu_custom_call.1} parent=1 // pred_check_branch
      %32 = sbr.rel (0) target = $region25
    $region24: #{tpu_custom_call.1} parent=1 // pred_region
      %33 = dma.done [#allocation3], 256
    $region25: #{tpu_custom_call.1} parent=1 // pred_fallthru
      _
    %v34 = vld [vmem:[%s4] sm:$0x1]
    %v35 = vld [vmem:[%s4 + $0x1] sm:$0x1]
    %v36 = vld [vmem:[%s4 + $0x2] sm:$0x1]
    %v37 = vld [vmem:[%s4 + $0x3] sm:$0x1]
    %v38 = vld [vmem:[%s4 + $0x4] sm:$0x1]
    %v39 = vld [vmem:[%s4 + $0x5] sm:$0x1]
    %v40 = vld [vmem:[%s4 + $0x6] sm:$0x1]
    %v41 = vld [vmem:[%s0] sm:$0xff]
    %v42 = vld [vmem:[#allocation2] sm:$0xff]
    %v43 = vld [vmem:[#allocation2 + $0x8] sm:$0xff]
    %v44 = vlaneseq
    %v45 = vshrl.u32 %v44, 7
    %v46 = vsub.s32 0, %v45
    %v47 = vrot.slane %v34, %v46
    %vm48 = vcmask 130048
    %v50 = vsel %vm48, %v41, 0
    %52 = vmatprep.subr.mxu0 0.0
    %53 = vmatpush1.msra.mxu0 %v42
    %54 = vmatprep.subr.mxu0 0.0
    %55 = vmatpush1.msra.mxu0 %v43
    %56 = vmatprep.subr.mxu0 0.0
    %57 = vmatpush1.msra.mxu0 0.0
    %58 = vmatprep.subr.mxu0 0.0
    %59 = vmatpush1.msra.mxu0 0.0
    %60 = vmatprep.subr.mxu0 0.0
    %61 = vmatpush1.msra.mxu0 0.0
    %62 = vmatprep.subr.mxu0 0.0
    %63 = vmatpush1.msra.mxu0 0.0
    %64 = vmatprep.subr.mxu0 0.0
    %65 = vmatpush1.msra.mxu0 0.0
    %66 = vmatprep.subr.mxu0 0.0
    %67 = vmatpush1.msra.mxu0 0.0
    %68 = vmatprep.subr.mxu0 0.0
    %69 = vmatpush1.msra.mxu0 0.0
    %70 = vmatprep.subr.mxu0 0.0
    %71 = vmatpush1.msra.mxu0 0.0
    %72 = vmatprep.subr.mxu0 0.0
    %73 = vmatpush1.msra.mxu0 0.0
    %74 = vmatprep.subr.mxu0 0.0
    %75 = vmatpush1.msra.mxu0 0.0
    %76 = vmatprep.subr.mxu0 0.0
    %77 = vmatpush1.msra.mxu0 0.0
    %78 = vmatprep.subr.mxu0 0.0
    %79 = vmatpush1.msra.mxu0 0.0
    %80 = vmatprep.subr.mxu0 0.0
    %81 = vmatpush1.msra.mxu0 0.0
    %82 = vmatprep.subr.mxu0 0.0
    %83 = vmatpush1.msra.mxu0 0.0
    %84 = vmatprep.subr.mxu0 0.0
    %85 = vmatpush1.msra.mxu0 0.0
    %86 = vmatprep.subr.mxu0 0.0
    %87 = vmatpush1.msra.mxu0 0.0
    %88 = vmatprep.subr.mxu0 0.0
    %89 = vmatpush1.msra.mxu0 0.0
    %90 = vmatprep.subr.mxu0 0.0
    %91 = vmatpush1.msra.mxu0 0.0
    %92 = vmatprep.subr.mxu0 0.0
    %93 = vmatpush1.msra.mxu0 0.0
    %94 = vmatprep.subr.mxu0 0.0
    %95 = vmatpush1.msra.mxu0 0.0
    %96 = vmatprep.subr.mxu0 0.0
    %97 = vmatpush1.msra.mxu0 0.0
    %98 = vmatprep.subr.mxu0 0.0
    %99 = vmatpush1.msra.mxu0 0.0
    %100 = vmatprep.subr.mxu0 0.0
    %101 = vmatpush1.msra.mxu0 0.0
    %102 = vmatprep.subr.mxu0 0.0
    %103 = vmatpush1.msra.mxu0 0.0
    %104 = vmatprep.subr.mxu0 0.0
    %105 = vmatpush1.msra.mxu0 0.0
    %106 = vmatprep.subr.mxu0 0.0
    %107 = vmatpush1.msra.mxu0 0.0
    %108 = vmatprep.subr.mxu0 0.0
    %109 = vmatpush1.msra.mxu0 0.0
    %110 = vmatprep.subr.mxu0 0.0
    %111 = vmatpush1.msra.mxu0 0.0
    %112 = vmatprep.subr.mxu0 0.0
    %113 = vmatpush1.msra.mxu0 0.0
    %114 = vmatprep.subr.mxu0 0.0
    %115 = vmatpush1.msra.mxu0 0.0
    %116 = vmatprep.mubr.f32.mxu0 0.0
    %117 = vmatmul.mubr.f32.gmra.mrb[0].mxu0 %v50
    %v118 = vpop.f32.mrb[0].mxu0
    %v119 = vadd.f32 %v47, %v118
    %v120 = vpop.f32.mrb[0].mxu0
    %121 = vdwg.mxu0
    %vm122 = vcmask 261120
    %v123 = vsel %vm122, %v119, 0.0
    %124 = vadd.xlane.f32.xlu0 %v123
    %v125 = vpop.xlane.xlu0 %124
    %v126 = vmul.f32 %v125, 0.03125
    %v127 = vsub.f32 %v119, %v126
    %v128 = vmul.f32 %v127, %v127
    %v129 = vsel %vm122, %v128, 0.0
    %130 = vadd.xlane.f32.xlu0 %v129
    %v131 = vpop.xlane.xlu0 %130
    %v132 = vmul.f32 %v131, 0.03125
    %v133 = vadd.f32 %v132, 1e-05
    %v134 = vrsqrt.pop %v133
    %v135 = vlaneseq
    %v136 = vshrl.u32 %v135, 7
    %v137 = vsub.s32 0, %v136
    %v138 = vrot.slane %v35, %v137
    %v139 = vmul.f32 %v138, %v134
    %v140 = vmul.f32 %v127, %v139
    %v141 = vlaneseq
    %v142 = vshrl.u32 %v141, 7
    %v143 = vsub.s32 0, %v142
    %v144 = vrot.slane %v36, %v143
    %v145 = vadd.f32 %v140, %v144
    %v146 = vmax.f32 %v145, 0.0
    %v147 = vld [vmem:[%s2] sm:$0xff]
    %v148 = vld [vmem:[%s2 + $0x8] sm:$0xff]
    %v149 = vld [vmem:[%s2 + $0x10] sm:$0xff]
    %v150 = vld [vmem:[%s2 + $0x18] sm:$0xff]
    %v151 = vlaneseq
    %v152 = vshrl.u32 %v151, 7
    %v153 = vsub.s32 0, %v152
    %v154 = vrot.slane %v37, %v153
    %v156 = vsel %vm122, %v146, 0
    %158 = vmatprep.subr.mxu0 0.0
    %159 = vmatpush1.msra.mxu0 %v147
    %160 = vmatprep.subr.mxu0 0.0
    %161 = vmatpush1.msra.mxu0 %v148
    %162 = vmatprep.subr.mxu0 0.0
    %163 = vmatpush1.msra.mxu0 %v149
    %164 = vmatprep.subr.mxu0 0.0
    %165 = vmatpush1.msra.mxu0 %v150
    %166 = vmatprep.subr.mxu0 0.0
    %167 = vmatpush1.msra.mxu0 0.0
    %168 = vmatprep.subr.mxu0 0.0
    %169 = vmatpush1.msra.mxu0 0.0
    %170 = vmatprep.subr.mxu0 0.0
    %171 = vmatpush1.msra.mxu0 0.0
    %172 = vmatprep.subr.mxu0 0.0
    %173 = vmatpush1.msra.mxu0 0.0
    %174 = vmatprep.subr.mxu0 0.0
    %175 = vmatpush1.msra.mxu0 0.0
    %176 = vmatprep.subr.mxu0 0.0
    %177 = vmatpush1.msra.mxu0 0.0
    %178 = vmatprep.subr.mxu0 0.0
    %179 = vmatpush1.msra.mxu0 0.0
    %180 = vmatprep.subr.mxu0 0.0
    %181 = vmatpush1.msra.mxu0 0.0
    %182 = vmatprep.subr.mxu0 0.0
    %183 = vmatpush1.msra.mxu0 0.0
    %184 = vmatprep.subr.mxu0 0.0
    %185 = vmatpush1.msra.mxu0 0.0
    %186 = vmatprep.subr.mxu0 0.0
    %187 = vmatpush1.msra.mxu0 0.0
    %188 = vmatprep.subr.mxu0 0.0
    %189 = vmatpush1.msra.mxu0 0.0
    %190 = vmatprep.subr.mxu0 0.0
    %191 = vmatpush1.msra.mxu0 0.0
    %192 = vmatprep.subr.mxu0 0.0
    %193 = vmatpush1.msra.mxu0 0.0
    %194 = vmatprep.subr.mxu0 0.0
    %195 = vmatpush1.msra.mxu0 0.0
    %196 = vmatprep.subr.mxu0 0.0
    %197 = vmatpush1.msra.mxu0 0.0
    %198 = vmatprep.subr.mxu0 0.0
    %199 = vmatpush1.msra.mxu0 0.0
    %200 = vmatprep.subr.mxu0 0.0
    %201 = vmatpush1.msra.mxu0 0.0
    %202 = vmatprep.subr.mxu0 0.0
    %203 = vmatpush1.msra.mxu0 0.0
    %204 = vmatprep.subr.mxu0 0.0
    %205 = vmatpush1.msra.mxu0 0.0
    %206 = vmatprep.subr.mxu0 0.0
    %207 = vmatpush1.msra.mxu0 0.0
    %208 = vmatprep.subr.mxu0 0.0
    %209 = vmatpush1.msra.mxu0 0.0
    %210 = vmatprep.subr.mxu0 0.0
    %211 = vmatpush1.msra.mxu0 0.0
    %212 = vmatprep.subr.mxu0 0.0
    %213 = vmatpush1.msra.mxu0 0.0
    %214 = vmatprep.subr.mxu0 0.0
    %215 = vmatpush1.msra.mxu0 0.0
    %216 = vmatprep.subr.mxu0 0.0
    %217 = vmatpush1.msra.mxu0 0.0
    %218 = vmatprep.subr.mxu0 0.0
    %219 = vmatpush1.msra.mxu0 0.0
    %220 = vmatprep.subr.mxu0 0.0
    %221 = vmatpush1.msra.mxu0 0.0
    %222 = vmatprep.mubr.f32.mxu0 0.0
    %223 = vmatmul.mubr.f32.gmra.mrb[0].mxu0 %v156
    %v224 = vpop.f32.mrb[0].mxu0
    %v225 = vadd.f32 %v154, %v224
    %v226 = vpop.f32.mrb[0].mxu0
    %227 = vdwg.mxu0
    %v228 = vsel %vm122, %v225, 0.0
    %229 = vadd.xlane.f32.xlu0 %v228
    %v230 = vpop.xlane.xlu0 %229
    %v231 = vmul.f32 %v230, 0.03125
    %v232 = vsub.f32 %v225, %v231
    %v233 = vmul.f32 %v232, %v232
    %v234 = vsel %vm122, %v233, 0.0
    %235 = vadd.xlane.f32.xlu0 %v234
    %v236 = vpop.xlane.xlu0 %235
    %v237 = vmul.f32 %v236, 0.03125
    %v238 = vadd.f32 %v237, 1e-05
    %v239 = vrsqrt.pop %v238
    %v240 = vlaneseq
    %v241 = vshrl.u32 %v240, 7
    %v242 = vsub.s32 0, %v241
    %v243 = vrot.slane %v38, %v242
    %v244 = vmul.f32 %v243, %v239
    %v245 = vmul.f32 %v232, %v244
    %v246 = vlaneseq
    %v247 = vshrl.u32 %v246, 7
    %v248 = vsub.s32 0, %v247
    %v249 = vrot.slane %v39, %v248
    %v250 = vadd.f32 %v245, %v249
    %v251 = vmax.f32 %v250, 0.0
    %v252 = vld [vmem:[%s3] sm:$0xff]
    %v253 = vld [vmem:[%s3 + $0x8] sm:$0xff]
    %v254 = vld [vmem:[%s3 + $0x10] sm:$0xff]
    %v255 = vld [vmem:[%s3 + $0x18] sm:$0xff]
    %v256 = vlaneseq
    %v257 = vshrl.u32 %v256, 7
    %v258 = vsub.s32 0, %v257
    %v259 = vrot.slane %v40, %v258
    %v261 = vsel %vm122, %v251, 0
    %263 = vmatprep.subr.mxu0 0.0
    %264 = vmatpush1.msra.mxu0 %v252
    %265 = vmatprep.subr.mxu0 0.0
    %266 = vmatpush1.msra.mxu0 %v253
    %267 = vmatprep.subr.mxu0 0.0
    %268 = vmatpush1.msra.mxu0 %v254
    %269 = vmatprep.subr.mxu0 0.0
    %270 = vmatpush1.msra.mxu0 %v255
    %271 = vmatprep.subr.mxu0 0.0
    %272 = vmatpush1.msra.mxu0 0.0
    %273 = vmatprep.subr.mxu0 0.0
    %274 = vmatpush1.msra.mxu0 0.0
    %275 = vmatprep.subr.mxu0 0.0
    %276 = vmatpush1.msra.mxu0 0.0
    %277 = vmatprep.subr.mxu0 0.0
    %278 = vmatpush1.msra.mxu0 0.0
    %279 = vmatprep.subr.mxu0 0.0
    %280 = vmatpush1.msra.mxu0 0.0
    %281 = vmatprep.subr.mxu0 0.0
    %282 = vmatpush1.msra.mxu0 0.0
    %283 = vmatprep.subr.mxu0 0.0
    %284 = vmatpush1.msra.mxu0 0.0
    %285 = vmatprep.subr.mxu0 0.0
    %286 = vmatpush1.msra.mxu0 0.0
    %287 = vmatprep.subr.mxu0 0.0
    %288 = vmatpush1.msra.mxu0 0.0
    %289 = vmatprep.subr.mxu0 0.0
    %290 = vmatpush1.msra.mxu0 0.0
    %291 = vmatprep.subr.mxu0 0.0
    %292 = vmatpush1.msra.mxu0 0.0
    %293 = vmatprep.subr.mxu0 0.0
    %294 = vmatpush1.msra.mxu0 0.0
    %295 = vmatprep.subr.mxu0 0.0
    %296 = vmatpush1.msra.mxu0 0.0
    %297 = vmatprep.subr.mxu0 0.0
    %298 = vmatpush1.msra.mxu0 0.0
    %299 = vmatprep.subr.mxu0 0.0
    %300 = vmatpush1.msra.mxu0 0.0
    %301 = vmatprep.subr.mxu0 0.0
    %302 = vmatpush1.msra.mxu0 0.0
    %303 = vmatprep.subr.mxu0 0.0
    %304 = vmatpush1.msra.mxu0 0.0
    %305 = vmatprep.subr.mxu0 0.0
    %306 = vmatpush1.msra.mxu0 0.0
    %307 = vmatprep.subr.mxu0 0.0
    %308 = vmatpush1.msra.mxu0 0.0
    %309 = vmatprep.subr.mxu0 0.0
    %310 = vmatpush1.msra.mxu0 0.0
    %311 = vmatprep.subr.mxu0 0.0
    %312 = vmatpush1.msra.mxu0 0.0
    %313 = vmatprep.subr.mxu0 0.0
    %314 = vmatpush1.msra.mxu0 0.0
    %315 = vmatprep.subr.mxu0 0.0
    %316 = vmatpush1.msra.mxu0 0.0
    %317 = vmatprep.subr.mxu0 0.0
    %318 = vmatpush1.msra.mxu0 0.0
    %319 = vmatprep.subr.mxu0 0.0
    %320 = vmatpush1.msra.mxu0 0.0
    %321 = vmatprep.subr.mxu0 0.0
    %322 = vmatpush1.msra.mxu0 0.0
    %323 = vmatprep.subr.mxu0 0.0
    %324 = vmatpush1.msra.mxu0 0.0
    %325 = vmatprep.subr.mxu0 0.0
    %326 = vmatpush1.msra.mxu0 0.0
    %327 = vmatprep.mubr.f32.mxu0 0.0
    %328 = vmatmul.mubr.f32.gmra.mrb[0].mxu0 %v261
    %v329 = vpop.f32.mrb[0].mxu0
    %v330 = vadd.f32 %v259, %v329
    %v331 = vpop.f32.mrb[0].mxu0
    %332 = vdwg.mxu0
    %vm333 = vcmask 31744
    %334 = vst.msk [vmem:[%s5] sm:$0xff] %vm333, %v330
    // Predicated region
    $region26: #{tpu_custom_call.1} parent=1 // pred_check
      _
    $region27: #{tpu_custom_call.1} parent=1 // pred_check_branch
      %336 = sbr.rel (0) target = $region29
    $region28: #{tpu_custom_call.1} parent=1 // pred_region
      _
    $region29: #{tpu_custom_call.1} parent=1 // pred_fallthru
      _
    // Predicated region
    $region30: #{tpu_custom_call.1} parent=1 // pred_check
      _
    $region31: #{tpu_custom_call.1} parent=1 // pred_check_branch
      %338 = sbr.rel (0) target = $region33
    $region32: #{tpu_custom_call.1} parent=1 // pred_region
      _
    $region33: #{tpu_custom_call.1} parent=1 // pred_fallthru
      _
    %339 = vsyncpa [#allocation3], 1

</llo_original>
